<compile_context>
chip_gen: v7x
topology: tpu7x:2x2x1
jax: 0.10.0
libtpu: 0.0.40
codegen_flags: <defaults>
</compile_context>

<pallas_src>
import math
import functools

import jax
import jax.numpy as jnp
from jax.experimental import pallas as pl
from jax.experimental.pallas import tpu as pltpu


def planar_kernel(params_ref, c_ref, x_ref, z_ref, ld_ref, *, group):
    lanes = x_ref.shape[-1]                      # 128
    per_row = lanes // group                     # particles per 128-lane row

    x = x_ref[...].astype(jnp.float32)           # (rows, 128)  particle-major, D interleaved
    c = c_ref[...].astype(jnp.float32)           # (rows, 1)    per-row observation term
    w_t = params_ref[0:1, :]                     # (1, 128)  w[d] tiled over lane groups
    u_t = params_ref[1:2, :]                     # (1, 128)  u[d] tiled over lane groups
    wu_t = params_ref[2:3, :]                    # (1, 128)  dot(w, u) splat

    lane = jax.lax.broadcasted_iota(jnp.int32, (1, lanes), 1)

    def pull_hi(v, s):   # lane i <- v[(i + s) % lanes]
        return pltpu.roll(v, (-s) % lanes, axis=1)

    def pull_lo(v, s):   # lane i <- v[(i - s) % lanes]
        return pltpu.roll(v, s % lanes, axis=1)

    # lin_p = sum_d x[p, d] * w[d]: window-sum of length `group` (valid at group-start
    # lanes), then broadcast the group-start value back over its group.  All lane
    # movement goes to the otherwise-idle XLU; the MXU is deliberately not used.
    acc = x * w_t
    k = 1
    while k < group:
        acc = acc + pull_hi(acc, k)
        k *= 2
    rep = acc
    k = 1
    while k < group:
        rep = jnp.where((lane & k) != 0, pull_lo(rep, k), rep)
        k *= 2

    lin = rep + c                                # group-constant per particle
    t = jnp.tanh(lin)                            # EUP

    # z = x + u * tanh(lin)
    z_ref[...] = (x + u_t * t).astype(z_ref.dtype)

    # log|det| = log(|1 + (1 - tanh(lin)^2) * (w.u)| + 1e-4), one value per particle.
    ld = jnp.log(jnp.abs(1.0 + (1.0 - t * t) * wu_t) + 0.0001)
    # Compact to one lane per particle: lane j <- lane group*j (log-shuffle on bits of j),
    # so log_det is written densely instead of replicated + sliced in the wrapper.
    cmp = ld
    k = 1
    while k < per_row:
        s = (group - 1) * k
        if s:
            cmp = jnp.where((lane & k) != 0, pull_hi(cmp, s), cmp)
        k *= 2
    ld_ref[...] = cmp[:, :per_row].astype(ld_ref.dtype)


def planar_forward(x, observation, time_idx, w, u, b, lin_w, lin_b, *, tile_r=2048):
    """x: (B, P, D), observation: (T, B, D). Returns (z: (B,P,D), log_det: (B,P) f32)."""
    B, P, D = x.shape
    LANES = 128
    if (D & (D - 1)) or (LANES % D):
        raise NotImplementedError("kernel assumes dim is a power of two dividing 128")
    per_row = LANES // D
    f32 = jnp.float32

    # --- tiny plain-JAX glue (O(B*D) work) ---------------------------------
    # Observation/Linear term collapses to one scalar per batch row:
    #   sum(b * (obs @ Wl.T + bl), -1) == obs @ (Wl.T @ b) + dot(b, bl)
    v = jnp.sum(lin_w.astype(f32) * b.astype(f32)[:, None], axis=0)            # (D,) = Wl.T @ b
    c_b = (jnp.sum(observation[time_idx].astype(f32) * v[None, :], axis=-1)
           + jnp.sum(b.astype(f32) * lin_b.astype(f32)))                       # (B,)

    # Single constant vreg-sized parameter block: w, u tiled per lane-group + dot(w, u).
    params = (jnp.zeros((8, LANES), f32)
              .at[0].set(jnp.tile(w.astype(f32), per_row))
              .at[1].set(jnp.tile(u.astype(f32), per_row))
              .at[2].set(jnp.sum(w.astype(f32) * u.astype(f32))))

    # Lane-dense view WITHOUT any transpose: free row-major reshape; each 128-lane
    # row holds `per_row` particles x D dims interleaved.
    P_pad = ((P + per_row - 1) // per_row) * per_row
    x_in = x if P_pad == P else jnp.pad(x, ((0, 0), (0, P_pad - P), (0, 0)))   # copy only if ragged
    rows_per_batch = (P_pad * D) // LANES
    R = B * rows_per_batch
    x2 = x_in.reshape(R, LANES)
    # One f32 per row (= per 32 particles), not one per particle.
    c_row = jnp.broadcast_to(c_b[:, None], (B, rows_per_batch)).reshape(R, 1)

    # --- tiling: large blocks amortize the ~0.35us/step overhead; keep >=2 blocks
    # when there is enough work so v7x's two TensorCores both get a share --------
    tile_r = int(tile_r)
    if tile_r >= R:
        tile_r = ((R + 1) // 2 + 7) // 8 * 8 if R >= 16 else R
    else:
        tile_r = max(8, (tile_r // 8) * 8)
    grid = (pl.cdiv(R, tile_r),)

    row_spec = pl.BlockSpec((tile_r, LANES), lambda i: (i, 0))
    c_spec = pl.BlockSpec((tile_r, 1), lambda i: (i, 0))
    p_spec = pl.BlockSpec((8, LANES), lambda i: (0, 0))
    ld_spec = pl.BlockSpec((tile_r, per_row), lambda i: (i, 0))

    # NOTE: if the caller no longer needs x, input_output_aliases={2: 0} would let z
    # reuse x's HBM allocation (capacity only; not applied so the reference check below
    # can still read x).
    z2, ld2 = pl.pallas_call(
        functools.partial(planar_kernel, group=D),
        out_shape=(jax.ShapeDtypeStruct((R, LANES), x.dtype),
                   jax.ShapeDtypeStruct((R, per_row), jnp.float32)),
        grid=grid,
        in_specs=[p_spec, c_spec, row_spec],
        out_specs=(row_spec, ld_spec),
        compiler_params=pltpu.CompilerParams(
            dimension_semantics=("parallel",),
            vmem_limit_bytes=32 * 1024 * 1024),
    )(params, c_row, x2)

    z = z2.reshape(B, P_pad, D)            # free reshape back to (B, P, D)
    log_det = ld2.reshape(B, P_pad)        # free reshape back to (B, P), float32
    if P_pad != P:
        z = z[:, :P, :]
        log_det = log_det[:, :P]
    return z, log_det


def planar_reference(x, observation, time_idx, w, u, b, lin_w, lin_b):
    # Pure elementwise/sum formulation (exact f32, no MXU) of the PyTorch forward.
    obs = observation[time_idx][:, None, :]                                    # (B, 1, D)
    obs_lin = jnp.sum(obs[..., None, :] * lin_w[None, None, :, :], axis=-1) + lin_b
    lin = (jnp.sum(x * w, axis=-1, keepdims=True)
           + jnp.sum(b * obs_lin, axis=-1, keepdims=True))                     # (B, P, 1)
    t = jnp.tanh(lin)
    z = x + u * t
    phi = (1.0 - t ** 2) * w
    log_det = jnp.log(jnp.abs(1.0 + jnp.sum(phi * u, axis=-1)) + 0.0001)
    return z, log_det


if __name__ == "__main__":
    B, P, D, T = 2, 1024, 4, 6   # batch, particles, latent dim, observation timesteps
    time_idx = 3
    dtype = jnp.float32

    key = jax.random.PRNGKey(0)
    k_x, k_obs, k_w, k_u, k_b, k_lw, k_lb = jax.random.split(key, 7)

    bound = math.sqrt(1.0 / D)
    x = jax.random.normal(k_x, (B, P, D), dtype)
    observation = jax.random.normal(k_obs, (T, B, D), dtype)
    w = jax.random.uniform(k_w, (D,), dtype, -bound, bound)
    u = jax.random.uniform(k_u, (D,), dtype, -bound, bound)
    b = jax.random.uniform(k_b, (D,), dtype, -bound, bound)
    lin_w = jax.random.uniform(k_lw, (D, D), dtype, -bound, bound)   # nn.Linear weight (out, in)
    lin_b = jax.random.uniform(k_lb, (D,), dtype, -bound, bound)     # nn.Linear bias

    # Small tile so the small demo still exercises a multi-step pipelined grid.
    fwd = jax.jit(functools.partial(planar_forward, time_idx=time_idx, tile_r=16))
    z, log_det = fwd(x, observation, w=w, u=u, b=b, lin_w=lin_w, lin_b=lin_b)
    z, log_det = jax.block_until_ready((z, log_det))

    z_ref, ld_ref = planar_reference(x, observation, time_idx, w, u, b, lin_w, lin_b)
    assert z.shape == (B, P, D) and log_det.shape == (B, P)
    assert jnp.allclose(z, z_ref, atol=1e-5, rtol=1e-5)
    assert jnp.allclose(log_det, ld_ref.astype(jnp.float32), atol=1e-5, rtol=1e-5)

    print("KERNEL_OK")
</pallas_src>

<mosaic_0001>
module attributes {stable_mosaic.version = 11 : i64} {
  func.func @planar_kernel(%arg0: i32, %arg1: memref<8x128xf32, #tpu.memory_space<vmem>>, %arg2: memref<16x1xf32, #tpu.memory_space<vmem>>, %arg3: memref<16x128xf32, #tpu.memory_space<vmem>>, %arg4: memref<16x128xf32, #tpu.memory_space<vmem>>, %arg5: memref<16x32xf32, #tpu.memory_space<vmem>>) attributes {dimension_semantics = [#tpu.dimension_semantics<parallel>], iteration_bounds = array<i64: 4>, scalar_prefetch = 0 : i64, scratch_operands = 0 : i64, tpu.core_type = #tpu.core_type<tc>, window_params = [{pipeline_mode = #tpu.pipeline_mode<synchronous>, transform_indices = @transform_0, window_bounds = array<i64: 8, 128>}, {transform_indices = @transform_1, window_bounds = array<i64: 16, 1>}, {transform_indices = @transform_2, window_bounds = array<i64: 16, 128>}, {transform_indices = @transform_3, window_bounds = array<i64: 16, 128>}, {transform_indices = @transform_4, window_bounds = array<i64: 16, 32>}]} {
    %c0 = arith.constant 0 : index
    %c0_0 = arith.constant 0 : index
    %0 = vector.load %arg3[%c0, %c0_0] : memref<16x128xf32, #tpu.memory_space<vmem>>, vector<16x128xf32>
    %c0_1 = arith.constant 0 : index
    %c0_2 = arith.constant 0 : index
    %1 = vector.load %arg2[%c0_1, %c0_2] : memref<16x1xf32, #tpu.memory_space<vmem>>, vector<16x1xf32>
    %c0_3 = arith.constant 0 : index
    %c0_4 = arith.constant 0 : index
    %2 = vector.load %arg1[%c0_3, %c0_4] : memref<8x128xf32, #tpu.memory_space<vmem>>, vector<1x128xf32>
    %c1 = arith.constant 1 : index
    %c0_5 = arith.constant 0 : index
    %3 = vector.load %arg1[%c1, %c0_5] : memref<8x128xf32, #tpu.memory_space<vmem>>, vector<1x128xf32>
    %c2 = arith.constant 2 : index
    %c0_6 = arith.constant 0 : index
    %4 = vector.load %arg1[%c2, %c0_6] : memref<8x128xf32, #tpu.memory_space<vmem>>, vector<1x128xf32>
    %5 = tpu.iota {dimensions = array<i32: 1>} : vector<1x128xi32>
    %6 = vector.broadcast %2 : vector<1x128xf32> to vector<16x128xf32>
    %7 = arith.mulf %0, %6 : vector<16x128xf32>
    %c127_i32 = arith.constant 127 : i32
    %8 = tpu.dynamic_rotate %7 by %c127_i32 dim 1 : vector<16x128xf32>, i32 -> vector<16x128xf32>
    %9 = arith.addf %7, %8 : vector<16x128xf32>
    %c126_i32 = arith.constant 126 : i32
    %10 = tpu.dynamic_rotate %9 by %c126_i32 dim 1 : vector<16x128xf32>, i32 -> vector<16x128xf32>
    %11 = arith.addf %9, %10 : vector<16x128xf32>
    %c1_i32 = arith.constant 1 : i32
    %12 = vector.broadcast %c1_i32 : i32 to vector<1x128xi32>
    %13 = arith.andi %5, %12 : vector<1x128xi32>
    %c0_i32 = arith.constant 0 : i32
    %14 = vector.broadcast %c0_i32 : i32 to vector<1x128xi32>
    %15 = arith.cmpi ne, %13, %14 : vector<1x128xi32>
    %c1_i32_7 = arith.constant 1 : i32
    %16 = tpu.dynamic_rotate %11 by %c1_i32_7 dim 1 : vector<16x128xf32>, i32 -> vector<16x128xf32>
    %17 = vector.shape_cast %15 : vector<1x128xi1> to vector<1x128xi1>
    %18 = vector.broadcast %17 : vector<1x128xi1> to vector<16x128xi1>
    %19 = arith.select %18, %16, %11 : vector<16x128xi1>, vector<16x128xf32>
    %c2_i32 = arith.constant 2 : i32
    %20 = vector.broadcast %c2_i32 : i32 to vector<1x128xi32>
    %21 = arith.andi %5, %20 : vector<1x128xi32>
    %c0_i32_8 = arith.constant 0 : i32
    %22 = vector.broadcast %c0_i32_8 : i32 to vector<1x128xi32>
    %23 = arith.cmpi ne, %21, %22 : vector<1x128xi32>
    %c2_i32_9 = arith.constant 2 : i32
    %24 = tpu.dynamic_rotate %19 by %c2_i32_9 dim 1 : vector<16x128xf32>, i32 -> vector<16x128xf32>
    %25 = vector.shape_cast %23 : vector<1x128xi1> to vector<1x128xi1>
    %26 = vector.broadcast %25 : vector<1x128xi1> to vector<16x128xi1>
    %27 = arith.select %26, %24, %19 : vector<16x128xi1>, vector<16x128xf32>
    %28 = vector.broadcast %1 : vector<16x1xf32> to vector<16x128xf32>
    %29 = arith.addf %27, %28 : vector<16x128xf32>
    %30 = math.tanh %29 : vector<16x128xf32>
    %31 = vector.broadcast %3 : vector<1x128xf32> to vector<16x128xf32>
    %32 = arith.mulf %31, %30 : vector<16x128xf32>
    %33 = arith.addf %0, %32 : vector<16x128xf32>
    %c0_10 = arith.constant 0 : index
    %c0_11 = arith.constant 0 : index
    %34 = vector.load %arg4[%c0_10, %c0_11] : memref<16x128xf32, #tpu.memory_space<vmem>>, vector<16x128xf32>
    tpu.vector_store %arg4[%c0_10, %c0_11], %33 {strides = array<i32>} : memref<16x128xf32, #tpu.memory_space<vmem>>, vector<16x128xf32>,
    %35 = arith.mulf %30, %30 : vector<16x128xf32>
    %cst = arith.constant 1.000000e+00 : f32
    %36 = vector.broadcast %cst : f32 to vector<16x128xf32>
    %37 = arith.subf %36, %35 : vector<16x128xf32>
    %38 = vector.broadcast %4 : vector<1x128xf32> to vector<16x128xf32>
    %39 = arith.mulf %37, %38 : vector<16x128xf32>
    %cst_12 = arith.constant 1.000000e+00 : f32
    %40 = vector.broadcast %cst_12 : f32 to vector<16x128xf32>
    %41 = arith.addf %40, %39 : vector<16x128xf32>
    %42 = math.absf %41 : vector<16x128xf32>
    %cst_13 = arith.constant 9.99999974E-5 : f32
    %43 = vector.broadcast %cst_13 : f32 to vector<16x128xf32>
    %44 = arith.addf %42, %43 : vector<16x128xf32>
    %45 = math.log %44 : vector<16x128xf32>
    %c1_i32_14 = arith.constant 1 : i32
    %46 = vector.broadcast %c1_i32_14 : i32 to vector<1x128xi32>
    %47 = arith.andi %5, %46 : vector<1x128xi32>
    %c0_i32_15 = arith.constant 0 : i32
    %48 = vector.broadcast %c0_i32_15 : i32 to vector<1x128xi32>
    %49 = arith.cmpi ne, %47, %48 : vector<1x128xi32>
    %c125_i32 = arith.constant 125 : i32
    %50 = tpu.dynamic_rotate %45 by %c125_i32 dim 1 : vector<16x128xf32>, i32 -> vector<16x128xf32>
    %51 = vector.shape_cast %49 : vector<1x128xi1> to vector<1x128xi1>
    %52 = vector.broadcast %51 : vector<1x128xi1> to vector<16x128xi1>
    %53 = arith.select %52, %50, %45 : vector<16x128xi1>, vector<16x128xf32>
    %c2_i32_16 = arith.constant 2 : i32
    %54 = vector.broadcast %c2_i32_16 : i32 to vector<1x128xi32>
    %55 = arith.andi %5, %54 : vector<1x128xi32>
    %c0_i32_17 = arith.constant 0 : i32
    %56 = vector.broadcast %c0_i32_17 : i32 to vector<1x128xi32>
    %57 = arith.cmpi ne, %55, %56 : vector<1x128xi32>
    %c122_i32 = arith.constant 122 : i32
    %58 = tpu.dynamic_rotate %53 by %c122_i32 dim 1 : vector<16x128xf32>, i32 -> vector<16x128xf32>
    %59 = vector.shape_cast %57 : vector<1x128xi1> to vector<1x128xi1>
    %60 = vector.broadcast %59 : vector<1x128xi1> to vector<16x128xi1>
    %61 = arith.select %60, %58, %53 : vector<16x128xi1>, vector<16x128xf32>
    %c4_i32 = arith.constant 4 : i32
    %62 = vector.broadcast %c4_i32 : i32 to vector<1x128xi32>
    %63 = arith.andi %5, %62 : vector<1x128xi32>
    %c0_i32_18 = arith.constant 0 : i32
    %64 = vector.broadcast %c0_i32_18 : i32 to vector<1x128xi32>
    %65 = arith.cmpi ne, %63, %64 : vector<1x128xi32>
    %c116_i32 = arith.constant 116 : i32
    %66 = tpu.dynamic_rotate %61 by %c116_i32 dim 1 : vector<16x128xf32>, i32 -> vector<16x128xf32>
    %67 = vector.shape_cast %65 : vector<1x128xi1> to vector<1x128xi1>
    %68 = vector.broadcast %67 : vector<1x128xi1> to vector<16x128xi1>
    %69 = arith.select %68, %66, %61 : vector<16x128xi1>, vector<16x128xf32>
    %c8_i32 = arith.constant 8 : i32
    %70 = vector.broadcast %c8_i32 : i32 to vector<1x128xi32>
    %71 = arith.andi %5, %70 : vector<1x128xi32>
    %c0_i32_19 = arith.constant 0 : i32
    %72 = vector.broadcast %c0_i32_19 : i32 to vector<1x128xi32>
    %73 = arith.cmpi ne, %71, %72 : vector<1x128xi32>
    %c104_i32 = arith.constant 104 : i32
    %74 = tpu.dynamic_rotate %69 by %c104_i32 dim 1 : vector<16x128xf32>, i32 -> vector<16x128xf32>
    %75 = vector.shape_cast %73 : vector<1x128xi1> to vector<1x128xi1>
    %76 = vector.broadcast %75 : vector<1x128xi1> to vector<16x128xi1>
    %77 = arith.select %76, %74, %69 : vector<16x128xi1>, vector<16x128xf32>
    %c16_i32 = arith.constant 16 : i32
    %78 = vector.broadcast %c16_i32 : i32 to vector<1x128xi32>
    %79 = arith.andi %5, %78 : vector<1x128xi32>
    %c0_i32_20 = arith.constant 0 : i32
    %80 = vector.broadcast %c0_i32_20 : i32 to vector<1x128xi32>
    %81 = arith.cmpi ne, %79, %80 : vector<1x128xi32>
    %c80_i32 = arith.constant 80 : i32
    %82 = tpu.dynamic_rotate %77 by %c80_i32 dim 1 : vector<16x128xf32>, i32 -> vector<16x128xf32>
    %83 = vector.shape_cast %81 : vector<1x128xi1> to vector<1x128xi1>
    %84 = vector.broadcast %83 : vector<1x128xi1> to vector<16x128xi1>
    %85 = arith.select %84, %82, %77 : vector<16x128xi1>, vector<16x128xf32>
    %86 = vector.extract_strided_slice %85 {offsets = [0, 0], sizes = [16, 32], strides = [1, 1]} : vector<16x128xf32> to vector<16x32xf32>
    %c0_21 = arith.constant 0 : index
    %c0_22 = arith.constant 0 : index
    %87 = vector.load %arg5[%c0_21, %c0_22] : memref<16x32xf32, #tpu.memory_space<vmem>>, vector<16x32xf32>
    tpu.vector_store %arg5[%c0_21, %c0_22], %86 {strides = array<i32>} : memref<16x32xf32, #tpu.memory_space<vmem>>, vector<16x32xf32>,
    return
  }
  func.func @transform_0(%arg0: i32) -> (i32, i32) {
    %c0_i32 = arith.constant 0 : i32
    %c0_i32_0 = arith.constant 0 : i32
    %c0_i32_1 = arith.constant 0 : i32
    return %c0_i32, %c0_i32_0 : i32, i32
  }
  func.func @transform_1(%arg0: i32) -> (i32, i32) {
    %c0_i32 = arith.constant 0 : i32
    %c0_i32_0 = arith.constant 0 : i32
    return %arg0, %c0_i32 : i32, i32
  }
  func.func @transform_2(%arg0: i32) -> (i32, i32) {
    %c0_i32 = arith.constant 0 : i32
    %c0_i32_0 = arith.constant 0 : i32
    return %arg0, %c0_i32 : i32, i32
  }
  func.func @transform_3(%arg0: i32) -> (i32, i32) {
    %c0_i32 = arith.constant 0 : i32
    %c0_i32_0 = arith.constant 0 : i32
    return %arg0, %c0_i32 : i32, i32
  }
  func.func @transform_4(%arg0: i32) -> (i32, i32) {
    %c0_i32 = arith.constant 0 : i32
    %c0_i32_0 = arith.constant 0 : i32
    return %arg0, %c0_i32 : i32, i32
  }
}

</mosaic_0001>

<llo_original>
// kernel: tile.13
$region0: #{tile.13}
  #allocation0 [shape = 's32[1]{0}', space=sflag, size = 0x4, scoped, tag = 'scoped memory for tile.13']
  %s0 = inlined_call_operand.vmem [shape: f32[4], index: 0, kind: input, shape index: {}]
  %s1 = inlined_call_operand.vmem [shape: f32[32,4], index: 1, kind: output, shape index: {}]
  // Predicated region
  $region2: #{tile.13} parent=0 // pred_check
    _
  $region3: #{tile.13} parent=0 // pred_check_branch
    %3 = sbr.rel (0) target = $region5
  $region4: #{tile.13} parent=0 // pred_region
    _
  $region5: #{tile.13} parent=0 // pred_fallthru
    _
  %v4 = vld [vmem:[%s0] ss:$0 sm:$0xff]
  %5 = vst [vmem:[%s1] sm:$0xff] %v4
  %s6 = scalar_lea.vmem %s1, 8
  %7 = vst [vmem:[%s6] sm:$0xff] %v4
  %s8 = scalar_lea.vmem %s1, 16
  %9 = vst [vmem:[%s8] sm:$0xff] %v4
  %s10 = scalar_lea.vmem %s1, 24
  %11 = vst [vmem:[%s10] sm:$0xff] %v4

// kernel: planar_forward.1
$region0: #{planar_forward.1}
  #allocation0 [shape = 'u32[]', space=smem, size = 0x4, offset = 0x4, fixed_abs, tag = 'smem constant byte address 0x4 - core index']
  #allocation1 [shape = 'u32[144,128]{1,0:T(1,128)}', space=vmem, size = 0x12000, scoped, tag = 'internal scratch']
  %s0 = inlined_call_operand.vmem [shape: f32[8,128], index: 0, kind: input, shape index: {}]
  %s1 = inlined_call_operand.vmem [shape: f32[64,1], index: 1, kind: input, shape index: {}]
  %s2 = inlined_call_operand.vmem [shape: f32[64,128], index: 2, kind: input, shape index: {}]
  %s3 = inlined_call_operand.vmem [shape: f32[64,128], index: 3, kind: output, shape index: {0}]
  %s4 = inlined_call_operand.vmem [shape: f32[64,32], index: 4, kind: output, shape index: {1}]
  %5 = xla_tuple %s3, %s4
  %s6 = sld [smem:[#allocation0]]
  $region53: #{planar_forward.1} parent=0
    _
  %s8 = ssub.s32 1, %s6
  %s9 = scalar_select 0, %s8, %s6
  loop: start=0, step=1, limit=6
  $region2: #{planar_forward.1} parent=0 // loop_pre_header
    _
  $region3: #{planar_forward.1} parent=0 // loop_header
    %s11 = sphi 0, %s15
    %p12 = scmp.ge.s32.totalorder %s11, 6
    %s19 = sphi 0, %s19
    %s21 = sphi 0, %s19
    %s22 = sphi 0, %s21
    %s36 = sphi 0, %s22
    %s42 = sphi 0, %s44
    %s45 = sphi 0, %s42
    %s46 = sphi 0, %s45
    %s62 = sphi 0, %s46
    %s68 = sphi 0, %s70
    %s71 = sphi 0, %s68
    %s72 = sphi 0, %s71
    %s88 = sphi 0, %s72
    %s94 = sphi 0, %s96
    %s97 = sphi 0, %s94
    %s98 = sphi 0, %s97
    %s114 = sphi 0, %s98
    %s120 = sphi 0, %s122
    %s123 = sphi 0, %s120
    %s124 = sphi 0, %s123
    %s140 = sphi 0, %s124
  $region4: #{planar_forward.1} parent=0 // loop_header_branch
    %14 = sbr.rel (%p12) target = $region8
  $region5: #{planar_forward.1} parent=0 // loop_body
    %s16 = ssub.s32 %s11, 1
    %s17 = ssub.s32 %s11, 2
    %s18 = sadd.s32 %s11, 1
    %s20 = sadd.s32 %s19, 1
    %p23 = scmp.eq.s32.totalorder %s11, 3
    %p24 = scmp.ne.s32.totalorder %s19, %s21
    %p25 = scmp.eq.s32.totalorder %s11, 0
    %p26 = por %p24, %p25
    %p27 = scmp.ne.s32.totalorder %s19, %s21
    %p28 = scmp.eq.s32.totalorder %s16, 3
    %p29 = por %p27, %p28
    %p30 = scmp.ne.s32.totalorder %s21, %s22
    %p31 = scmp.eq.s32.totalorder %s16, 0
    %p32 = por %p30, %p31
    %p33 = scmp.ne.s32.totalorder %s21, %s22
    %p34 = scmp.eq.s32.totalorder %s17, 3
    %p35 = por %p33, %p34
    %p37 = scmp.ne.s32.totalorder %s22, %s36
    %p38 = scmp.eq.s32.totalorder %s17, 0
    %p39 = por %p37, %p38
    %s40 = ssub.s32 %s11, %s18
    %p41 = scmp.eq.s32.totalorder %s40, 0
    %s43 = sadd.s32 %s42, 1
    %s44 = scalar_select %p41, %s42, %s43
    %p47 = pneg %p41
    %p48 = scmp.eq.s32.totalorder %s11, 3
    %p49 = por %p47, %p48
    %p50 = scmp.ne.s32.totalorder %s42, %s45
    %p51 = scmp.eq.s32.totalorder %s11, 0
    %p52 = por %p50, %p51
    %p53 = scmp.ne.s32.totalorder %s42, %s45
    %p54 = scmp.eq.s32.totalorder %s16, 3
    %p55 = por %p53, %p54
    %p56 = scmp.ne.s32.totalorder %s45, %s46
    %p57 = scmp.eq.s32.totalorder %s16, 0
    %p58 = por %p56, %p57
    %p59 = scmp.ne.s32.totalorder %s45, %s46
    %p60 = scmp.eq.s32.totalorder %s17, 3
    %p61 = por %p59, %p60
    %p63 = scmp.ne.s32.totalorder %s46, %s62
    %p64 = scmp.eq.s32.totalorder %s17, 0
    %p65 = por %p63, %p64
    %s66 = ssub.s32 %s11, %s18
    %p67 = scmp.eq.s32.totalorder %s66, 0
    %s69 = sadd.s32 %s68, 1
    %s70 = scalar_select %p67, %s68, %s69
    %p73 = pneg %p67
    %p74 = scmp.eq.s32.totalorder %s11, 3
    %p75 = por %p73, %p74
    %p76 = scmp.ne.s32.totalorder %s68, %s71
    %p77 = scmp.eq.s32.totalorder %s11, 0
    %p78 = por %p76, %p77
    %p79 = scmp.ne.s32.totalorder %s68, %s71
    %p80 = scmp.eq.s32.totalorder %s16, 3
    %p81 = por %p79, %p80
    %p82 = scmp.ne.s32.totalorder %s71, %s72
    %p83 = scmp.eq.s32.totalorder %s16, 0
    %p84 = por %p82, %p83
    %p85 = scmp.ne.s32.totalorder %s71, %s72
    %p86 = scmp.eq.s32.totalorder %s17, 3
    %p87 = por %p85, %p86
    %p89 = scmp.ne.s32.totalorder %s72, %s88
    %p90 = scmp.eq.s32.totalorder %s17, 0
    %p91 = por %p89, %p90
    %s92 = ssub.s32 %s11, %s18
    %p93 = scmp.eq.s32.totalorder %s92, 0
    %s95 = sadd.s32 %s94, 1
    %s96 = scalar_select %p93, %s94, %s95
    %p99 = pneg %p93
    %p100 = scmp.eq.s32.totalorder %s11, 3
    %p101 = por %p99, %p100
    %p102 = scmp.ne.s32.totalorder %s94, %s97
    %p103 = scmp.eq.s32.totalorder %s11, 0
    %p104 = por %p102, %p103
    %p105 = scmp.ne.s32.totalorder %s94, %s97
    %p106 = scmp.eq.s32.totalorder %s16, 3
    %p107 = por %p105, %p106
    %p108 = scmp.ne.s32.totalorder %s97, %s98
    %p109 = scmp.eq.s32.totalorder %s16, 0
    %p110 = por %p108, %p109
    %p111 = scmp.ne.s32.totalorder %s97, %s98
    %p112 = scmp.eq.s32.totalorder %s17, 3
    %p113 = por %p111, %p112
    %p115 = scmp.ne.s32.totalorder %s98, %s114
    %p116 = scmp.eq.s32.totalorder %s17, 0
    %p117 = por %p115, %p116
    %s118 = ssub.s32 %s11, %s18
    %p119 = scmp.eq.s32.totalorder %s118, 0
    %s121 = sadd.s32 %s120, 1
    %s122 = scalar_select %p119, %s120, %s121
    %p125 = pneg %p119
    %p126 = scmp.eq.s32.totalorder %s11, 3
    %p127 = por %p125, %p126
    %p128 = scmp.ne.s32.totalorder %s120, %s123
    %p129 = scmp.eq.s32.totalorder %s11, 0
    %p130 = por %p128, %p129
    %p131 = scmp.ne.s32.totalorder %s120, %s123
    %p132 = scmp.eq.s32.totalorder %s16, 3
    %p133 = por %p131, %p132
    %p134 = scmp.ne.s32.totalorder %s123, %s124
    %p135 = scmp.eq.s32.totalorder %s16, 0
    %p136 = por %p134, %p135
    %p137 = scmp.ne.s32.totalorder %s123, %s124
    %p138 = scmp.eq.s32.totalorder %s17, 3
    %p139 = por %p137, %p138
    %p141 = scmp.ne.s32.totalorder %s124, %s140
    %p142 = scmp.eq.s32.totalorder %s17, 0
    %p143 = por %p141, %p142
    %p144 = scmp.le.s32.totalorder 1, %s11
    %p145 = scmp.lt.s32.totalorder %s11, 5
    %p146 = pnand %p144, %p145
    %p147 = pneg %p146
    // Predicated region
    $region9: #{planar_forward.1} parent=5 // pred_check
      _
    $region10: #{planar_forward.1} parent=5 // pred_check_branch
      %149 = sbr.rel (%p146) target = $region12
    $region11: #{planar_forward.1} parent=5 // pred_region
      %s150 = ssub.s32 %s11, 1
      // Predicated region
      $region13: #{planar_forward.1} parent=11 // pred_check
        %p151 = pneg %p32
      $region14: #{planar_forward.1} parent=11 // pred_check_branch
        %153 = sbr.rel (%p151) target = $region16
      $region15: #{planar_forward.1} parent=11 // pred_region
        _
      $region16: #{planar_forward.1} parent=11 // pred_fallthru
        _
    $region12: #{planar_forward.1} parent=5 // pred_fallthru
      _
    %p154 = scmp.lt.s32.totalorder %s11, 4
    // Predicated region
    $region17: #{planar_forward.1} parent=5 // pred_check
      %p155 = pneg %p154
    $region18: #{planar_forward.1} parent=5 // pred_check_branch
      %157 = sbr.rel (%p155) target = $region20
    $region19: #{planar_forward.1} parent=5 // pred_region
      // Predicated region
      $region21: #{planar_forward.1} parent=19 // pred_check
        %p158 = pneg %p52
      $region22: #{planar_forward.1} parent=19 // pred_check_branch
        %160 = sbr.rel (%p158) target = $region24
      $region23: #{planar_forward.1} parent=19 // pred_region
        %s161 = smul.u32 2, %s11
        %p162 = scmp.lt.s32.totalorder %s161, 7
        %s163 = scalar_select %p162, %s161, 7
        %s164 = smul.addr %s163, 8
        %s165 = scalar_lea.vmem %s1, %s164
        %s166 = smul.u32 2, %s11
      $region24: #{planar_forward.1} parent=19 // pred_fallthru
        _
      // Predicated region
      $region25: #{planar_forward.1} parent=19 // pred_check
        %p167 = pneg %p78
      $region26: #{planar_forward.1} parent=19 // pred_check_branch
        %169 = sbr.rel (%p167) target = $region28
      $region27: #{planar_forward.1} parent=19 // pred_region
        %s170 = smul.u32 2, %s11
        %p171 = scmp.lt.s32.totalorder %s170, 7
        %s172 = scalar_select %p171, %s170, 7
        %s173 = smul.addr %s172, 8
        %s174 = scalar_lea.vmem %s2, %s173
        %s175 = smul.u32 2, %s11
      $region28: #{planar_forward.1} parent=19 // pred_fallthru
        _
    $region20: #{planar_forward.1} parent=5 // pred_fallthru
      _
    %p176 = scmp.le.s32.totalorder 1, %s11
    %p177 = scmp.lt.s32.totalorder %s11, 5
    %p178 = pnand %p176, %p177
    %p179 = pneg %p178
    // Predicated region
    $region29: #{planar_forward.1} parent=5 // pred_check
      _
    $region30: #{planar_forward.1} parent=5 // pred_check_branch
      %181 = sbr.rel (%p178) target = $region32
    $region31: #{planar_forward.1} parent=5 // pred_region
      %s182 = ssub.s32 %s11, 1
      %p183 = pneg %p32
      %p184 = pneg %p29
      %s185 = smul.u32 2, %s16
      %p186 = scmp.lt.s32.totalorder %s185, 7
      %s187 = scalar_select %p186, %s185, 7
      %s188 = smul.addr %s187, 8
      %s189 = scalar_lea.vmem %s1, %s188
      %p190 = pneg %p58
      %p191 = pneg %p55
      %s192 = smul.u32 2, %s16
      %p193 = scmp.lt.s32.totalorder %s192, 7
      %s194 = scalar_select %p193, %s192, 7
      %s195 = smul.addr %s194, 8
      %s196 = scalar_lea.vmem %s2, %s195
      %p197 = pneg %p84
      %p198 = pneg %p81
      %p199 = pneg %p110
      %p200 = pneg %p107
      %s201 = smul.u32 2, %s16
      %p202 = scmp.lt.s32.totalorder %s201, 7
      %s203 = scalar_select %p202, %s201, 7
      %s204 = smul.addr %s203, 8
      %s205 = scalar_lea.vmem %s3, %s204
      %p206 = pneg %p136
      %p207 = pneg %p133
      %s208 = smul.u32 2, %s16
      %p209 = scmp.lt.s32.totalorder %s208, 7
      %s210 = scalar_select %p209, %s208, 7
      %s211 = smul.addr %s210, 8
      %s212 = scalar_lea.vmem %s4, %s211
      %s213 = smul.u32 2, %s16
      %p214 = scmp.lt.s32.totalorder %s213, 7
      %s215 = scalar_select %p214, %s213, 7
      %s216 = smul.addr %s215, 8
      %s217 = scalar_lea.vmem %s1, %s216
      %s218 = smul.u32 2, %s16
      %s219 = smul.u32 2, %s16
      %p220 = scmp.lt.s32.totalorder %s219, 7
      %s221 = scalar_select %p220, %s219, 7
      %s222 = smul.addr %s221, 8
      %s223 = scalar_lea.vmem %s2, %s222
      %s224 = smul.u32 2, %s16
      %s225 = smul.u32 2, %s16
      %p226 = scmp.lt.s32.totalorder %s225, 7
      %s227 = scalar_select %p226, %s225, 7
      %s228 = smul.addr %s227, 8
      %s229 = scalar_lea.vmem %s3, %s228
      %s230 = smul.u32 2, %s16
      %s231 = smul.u32 2, %s16
      %p232 = scmp.lt.s32.totalorder %s231, 7
      %s233 = scalar_select %p232, %s231, 7
      %s234 = smul.addr %s233, 8
      %s235 = scalar_lea.vmem %s4, %s234
      %s236 = smul.u32 2, %s16
      %v237 = vld [vmem:[%s223] sm:$0xff]
      %v238 = vld [vmem:[%s223 + $0x8] sm:$0xff]
      %v239 = vld [vmem:[%s217] sm:$0xff]
      %v240 = vld [vmem:[%s217 + $0x8] sm:$0xff]
      %v241 = vld [vmem:[%s0] sm:$0x1]
      %v242 = vld [vmem:[%s0 + $0x1] sm:$0x1]
      %v243 = vld [vmem:[%s0 + $0x2] sm:$0x1]
      %v244 = vlaneseq
      %v245 = vand.u32 %v244, 127
      %v246 = vlaneseq
      %v247 = vshrl.u32 %v246, 7
      %v248 = vsub.s32 0, %v247
      %v249 = vrot.slane %v241, %v248
      %v250 = vmul.f32 %v237, %v249
      %v251 = vmul.f32 %v238, %v249
      %252 = vrot.lane.b32.xlu0 %v250, 127
      %v253 = vpop.permute.xlu0 %252
      %254 = vrot.lane.b32.xlu0 %v251, 127
      %v255 = vpop.permute.xlu0 %254
      %v256 = vadd.f32 %v250, %v253
      %v257 = vadd.f32 %v251, %v255
      %258 = vrot.lane.b32.xlu0 %v256, 126
      %v259 = vpop.permute.xlu0 %258
      %260 = vrot.lane.b32.xlu0 %v257, 126
      %v261 = vpop.permute.xlu0 %260
      %v262 = vadd.f32 %v256, %v259
      %v263 = vadd.f32 %v257, %v261
      %v264 = vand.u32 %v245, 1
      %vm265 = vcmp.ne.s32.totalorder %v264, 0
      %266 = vrot.lane.b32.xlu0 %v262, 1
      %v267 = vpop.permute.xlu0 %266
      %268 = vrot.lane.b32.xlu0 %v263, 1
      %v269 = vpop.permute.xlu0 %268
      %v270 = vsel %vm265, 1, 0
      %vm271 = vcmp.eq.s32.totalorder %v270, 1
      %v272 = vsel %vm271, %v267, %v262
      %v273 = vsel %vm271, %v269, %v263
      %v274 = vand.u32 %v245, 2
      %vm275 = vcmp.ne.s32.totalorder %v274, 0
      %276 = vrot.lane.b32.xlu0 %v272, 2
      %v277 = vpop.permute.xlu0 %276
      %278 = vrot.lane.b32.xlu0 %v273, 2
      %v279 = vpop.permute.xlu0 %278
      %v280 = vsel %vm275, 1, 0
      %vm281 = vcmp.eq.s32.totalorder %v280, 1
      %v282 = vsel %vm281, %v277, %v272
      %v283 = vsel %vm281, %v279, %v273
      %285 = vset.pattern.permute.xlu0 0
      %286 = vperm.xlu0 %285, %v239
      %v287 = vpop.permute.xlu0 %286
      %290 = vset.pattern.permute.xlu0 0
      %291 = vperm.xlu0 %290, %v240
      %v292 = vpop.permute.xlu0 %291
      %v294 = vadd.f32 %v282, %v287
      %v295 = vadd.f32 %v283, %v292
      %v296 = vtanh.pop %v294
      %v297 = vtanh.pop %v295
      %v298 = vlaneseq
      %v299 = vshrl.u32 %v298, 7
      %v300 = vsub.s32 0, %v299
      %v301 = vrot.slane %v242, %v300
      %v302 = vmul.f32 %v301, %v296
      %v303 = vmul.f32 %v301, %v297
      %v304 = vadd.f32 %v237, %v302
      %v305 = vadd.f32 %v238, %v303
      %306 = vst [vmem:[%s229] sm:$0xff] %v304
      %307 = vst [vmem:[%s229 + $0x8] sm:$0xff] %v305
      %v308 = vmul.f32 %v296, %v296
      %v309 = vmul.f32 %v297, %v297
      %v310 = vsub.f32 1.0, %v308
      %v311 = vsub.f32 1.0, %v309
      %v312 = vlaneseq
      %v313 = vshrl.u32 %v312, 7
      %v314 = vsub.s32 0, %v313
      %v315 = vrot.slane %v243, %v314
      %v316 = vmul.f32 %v310, %v315
      %v317 = vmul.f32 %v311, %v315
      %v318 = vadd.f32 %v316, 1.0
      %v319 = vadd.f32 %v317, 1.0
      %v320 = vand.u32 2147483647, %v318
      %v321 = vand.u32 2147483647, %v319
      %v322 = vadd.f32 %v320, 0.0001
      %v323 = vadd.f32 %v321, 0.0001
      %v324 = vlog2.pop %v322
      %v325 = vmul.f32 %v324, 0.6931472
      %v326 = vlog2.pop %v323
      %v327 = vmul.f32 %v326, 0.6931472
      %328 = vrot.lane.b32.xlu0 %v325, 125
      %v329 = vpop.permute.xlu0 %328
      %330 = vrot.lane.b32.xlu0 %v327, 125
      %v331 = vpop.permute.xlu0 %330
      %v332 = vsel %vm271, %v329, %v325
      %v333 = vsel %vm271, %v331, %v327
      %334 = vrot.lane.b32.xlu0 %v332, 122
      %v335 = vpop.permute.xlu0 %334
      %336 = vrot.lane.b32.xlu0 %v333, 122
      %v337 = vpop.permute.xlu0 %336
      %v338 = vsel %vm281, %v335, %v332
      %v339 = vsel %vm281, %v337, %v333
      %v340 = vand.u32 %v245, 4
      %vm341 = vcmp.ne.s32.totalorder %v340, 0
      %342 = vrot.lane.b32.xlu0 %v338, 116
      %v343 = vpop.permute.xlu0 %342
      %344 = vrot.lane.b32.xlu0 %v339, 116
      %v345 = vpop.permute.xlu0 %344
      %v346 = vsel %vm341, 1, 0
      %vm347 = vcmp.eq.s32.totalorder %v346, 1
      %v348 = vsel %vm347, %v343, %v338
      %v349 = vsel %vm347, %v345, %v339
      %v350 = vand.u32 %v245, 8
      %vm351 = vcmp.ne.s32.totalorder %v350, 0
      %352 = vrot.lane.b32.xlu0 %v348, 104
      %v353 = vpop.permute.xlu0 %352
      %354 = vrot.lane.b32.xlu0 %v349, 104
      %v355 = vpop.permute.xlu0 %354
      %v356 = vsel %vm351, 1, 0
      %vm357 = vcmp.eq.s32.totalorder %v356, 1
      %v358 = vsel %vm357, %v353, %v348
      %v359 = vsel %vm357, %v355, %v349
      %v360 = vand.u32 %v245, 16
      %vm361 = vcmp.ne.s32.totalorder %v360, 0
      %362 = vrot.lane.b32.xlu0 %v358, 80
      %v363 = vpop.permute.xlu0 %362
      %364 = vrot.lane.b32.xlu0 %v359, 80
      %v365 = vpop.permute.xlu0 %364
      %v366 = vsel %vm361, 1, 0
      %vm367 = vcmp.eq.s32.totalorder %v366, 1
      %v368 = vsel %vm367, %v363, %v358
      %v369 = vsel %vm367, %v365, %v359
      %vm370 = vcmask 261120
      %371 = vst.msk [vmem:[%s235] sm:$0xff] %vm370, %v368
      %372 = vst.msk [vmem:[%s235 + $0x8] sm:$0xff] %vm370, %v369
      %s373 = smul.u32 2, %s16
      %p374 = scmp.lt.s32.totalorder %s373, 7
      %s375 = scalar_select %p374, %s373, 7
      %s376 = smul.addr %s375, 8
      %s377 = scalar_lea.vmem %s3, %s376
      %s378 = smul.u32 2, %s16
      %p379 = scmp.lt.s32.totalorder %s378, 7
      %s380 = scalar_select %p379, %s378, 7
      %s381 = smul.addr %s380, 8
      %s382 = scalar_lea.vmem %s4, %s381
      // Predicated region
      $region33: #{planar_forward.1} parent=31 // pred_check
        %p383 = pneg %p107
      $region34: #{planar_forward.1} parent=31 // pred_check_branch
        %385 = sbr.rel (%p383) target = $region36
      $region35: #{planar_forward.1} parent=31 // pred_region
        %s386 = smul.u32 2, %s16
      $region36: #{planar_forward.1} parent=31 // pred_fallthru
        _
      // Predicated region
      $region37: #{planar_forward.1} parent=31 // pred_check
        %p387 = pneg %p133
      $region38: #{planar_forward.1} parent=31 // pred_check_branch
        %389 = sbr.rel (%p387) target = $region40
      $region39: #{planar_forward.1} parent=31 // pred_region
        %s390 = smul.u32 2, %s16
      $region40: #{planar_forward.1} parent=31 // pred_fallthru
        _
    $region32: #{planar_forward.1} parent=5 // pred_fallthru
      _
    %p391 = scmp.le.s32.totalorder 2, %s11
    // Predicated region
    $region41: #{planar_forward.1} parent=5 // pred_check
      %p392 = pneg %p391
    $region42: #{planar_forward.1} parent=5 // pred_check_branch
      %394 = sbr.rel (%p392) target = $region44
    $region43: #{planar_forward.1} parent=5 // pred_region
      %s395 = ssub.s32 %s11, 2
      // Predicated region
      $region45: #{planar_forward.1} parent=43 // pred_check
        %p396 = pneg %p113
      $region46: #{planar_forward.1} parent=43 // pred_check_branch
        %398 = sbr.rel (%p396) target = $region48
      $region47: #{planar_forward.1} parent=43 // pred_region
        %s399 = smul.u32 2, %s17
        %p400 = scmp.lt.s32.totalorder %s399, 7
        %s401 = scalar_select %p400, %s399, 7
        %s402 = smul.addr %s401, 8
        %s403 = scalar_lea.vmem %s3, %s402
      $region48: #{planar_forward.1} parent=43 // pred_fallthru
        _
      // Predicated region
      $region49: #{planar_forward.1} parent=43 // pred_check
        %p404 = pneg %p139
      $region50: #{planar_forward.1} parent=43 // pred_check_branch
        %406 = sbr.rel (%p404) target = $region52
      $region51: #{planar_forward.1} parent=43 // pred_region
        %s407 = smul.u32 2, %s17
        %p408 = scmp.lt.s32.totalorder %s407, 7
        %s409 = scalar_select %p408, %s407, 7
        %s410 = smul.addr %s409, 8
        %s411 = scalar_lea.vmem %s4, %s410
      $region52: #{planar_forward.1} parent=43 // pred_fallthru
        _
    $region44: #{planar_forward.1} parent=5 // pred_fallthru
      _
  $region6: #{planar_forward.1} parent=0 // loop_footer
    %s15 = sadd.s32 1, %s11
  $region7: #{planar_forward.1} parent=0 // loop_footer_branch
    %10 = sbr.rel target = $region3
  $region8: #{planar_forward.1} parent=0 // loop_exit
    _

</llo_original>
